<compile_context>
chip_gen: v6e
topology: v6e:2x2x1
jax: 0.10.0
libtpu: 0.0.40
codegen_flags: <defaults>
</compile_context>

<pallas_src>
import jax
import jax.numpy as jnp
from jax.experimental import pallas as pl
from jax.experimental.pallas import tpu as pltpu


VMEM_LIMIT_BYTES = 48 * 1024 * 1024   # > default scoped limits, < physical on all gens


# -----------------------------------------------------------------------------
# Kernel 1: conv1 (1x1) + bias as a single (C4, Cin) x (Cin, HW) MXU matmul,
# emitting per-batch partial BN1 statistics. Fully lane-dense (HW last).
# -----------------------------------------------------------------------------
def conv1_kernel(x_ref, w1_ref, b1_ref, y1_ref, sum_ref, sq_ref):
    # x_ref : (1, Cin, HW) f32    w1_ref : (C4, Cin) bf16    b1_ref : (C4, 1) f32
    # y1_ref: (1, C4, HW) bf16    sum_ref/sq_ref : (1, C4, 1) f32 (per-batch partials)
    x = x_ref[0].astype(jnp.bfloat16)                              # (Cin, HW)
    y = jax.lax.dot_general(w1_ref[...], x,
                            dimension_numbers=(((1,), (0,)), ((), ())),
                            preferred_element_type=jnp.float32)    # (C4, HW) f32
    y = y + b1_ref[...]                                            # (C4, 1) lane-broadcast
    sum_ref[0] = jnp.sum(y, axis=1, keepdims=True)                 # lane-axis reduce
    sq_ref[0] = jnp.sum(y * y, axis=1, keepdims=True)
    y1_ref[0] = y.astype(y1_ref.dtype)                             # lane-dense store


# -----------------------------------------------------------------------------
# Kernel 2: fused BN1+ReLU, then ConvTranspose2d(k=4, s=2, p=1) decomposed into
# 4 output phases. Per phase the 2x2 taps are K-concatenated into ONE
# (C4, 4*C4) x (4*C4, H, W) matmul. Emits per-batch partial BN2 statistics.
# -----------------------------------------------------------------------------
def deconv_kernel(y1_ref, s1_ref, t1_ref, wd_ref, b2_ref,
                  y2_ref, sum_ref, sq_ref, pad_ref):
    # y1_ref : (1, C4, H, W) bf16        s1_ref/t1_ref : (C4, 1) f32 (BN1 scale/shift)
    # wd_ref : (4, C4, 4*C4) bf16        b2_ref : (C4, 1) f32
    # y2_ref : (1, 4, C4, H, W) bf16     sum_ref/sq_ref : (1, C4, 1) f32
    # pad_ref: (C4, H+2, W+2) bf16 VMEM scratch (in-kernel halo, no HBM pad pass)
    C4, H, W = y1_ref.shape[1], y1_ref.shape[2], y1_ref.shape[3]

    # Fused BN1 + ReLU on the input tile (f32 VPU math, bf16 for the MXU).
    s1 = s1_ref[...].reshape(C4, 1, 1)
    t1 = t1_ref[...].reshape(C4, 1, 1)
    act = jnp.maximum(y1_ref[0].astype(jnp.float32) * s1 + t1, 0.0).astype(jnp.bfloat16)

    # Zero only the 1-px halo ring; the interior is fully overwritten by `act`.
    zrow = jnp.zeros((C4, 1, W + 2), jnp.bfloat16)
    zcol = jnp.zeros((C4, H, 1), jnp.bfloat16)
    pad_ref[:, 0:1, :] = zrow
    pad_ref[:, H + 1:H + 2, :] = zrow
    pad_ref[:, 1:H + 1, 0:1] = zcol
    pad_ref[:, 1:H + 1, W + 1:W + 2] = zcol
    pad_ref[:, 1:H + 1, 1:W + 1] = act

    wdv = wd_ref[...]                                              # small, load once
    b2 = b2_ref[...].reshape(C4, 1, 1)
    ssum = jnp.zeros((C4, 1), jnp.float32)
    ssq = jnp.zeros((C4, 1), jnp.float32)

    for ry in range(2):
        for rx in range(2):
            p = 2 * ry + rx
            # K-concatenate the 2x2 taps -> single MXU matmul per phase; tap patches are
            # sliced off the padded ref immediately before use (no big live temp).
            patch = jnp.concatenate(
                [pad_ref[:, ry + a:ry + a + H, rx + b:rx + b + W]
                 for a in range(2) for b in range(2)], axis=0)     # (4*C4, H, W)
            acc = jax.lax.dot_general(
                wdv[p], patch,
                dimension_numbers=(((1,), (0,)), ((), ())),
                preferred_element_type=jnp.float32) + b2           # (C4, H, W) f32
            ssum = ssum + jnp.sum(jnp.sum(acc, axis=2), axis=1, keepdims=True)
            ssq = ssq + jnp.sum(jnp.sum(acc * acc, axis=2), axis=1, keepdims=True)
            y2_ref[0, p] = acc.astype(y2_ref.dtype)

    sum_ref[0] = ssum
    sq_ref[0] = ssq


# -----------------------------------------------------------------------------
# Kernel 3: fused BN2+ReLU, then conv3 (1x1) + bias as ONE (NF, C4) x (C4, HW)
# matmul per (image, phase) grid step, plus per-(image, phase) partial BN3 stats.
# -----------------------------------------------------------------------------
def conv3_kernel(y2_ref, s2_ref, t2_ref, w3_ref, b3_ref, y3_ref, sum_ref, sq_ref):
    # y2_ref : (1, 1, C4, HW) bf16    s2_ref/t2_ref : (C4, 1) f32
    # w3_ref : (NF, C4) bf16          b3_ref : (NF, 1) f32
    # y3_ref : (1, 1, NF, HW) bf16    sum_ref/sq_ref : (1, 1, NF, 1) f32
    act = jnp.maximum(y2_ref[0, 0].astype(jnp.float32) * s2_ref[...] + t2_ref[...], 0.0)
    act = act.astype(jnp.bfloat16)                                 # (C4, HW)
    r = jax.lax.dot_general(w3_ref[...], act,
                            dimension_numbers=(((1,), (0,)), ((), ())),
                            preferred_element_type=jnp.float32)    # (NF, HW) f32
    r = r + b3_ref[...]
    sum_ref[0, 0] = jnp.sum(r, axis=1, keepdims=True)
    sq_ref[0, 0] = jnp.sum(r * r, axis=1, keepdims=True)
    y3_ref[0, 0] = r.astype(y3_ref.dtype)                          # lane-dense store


# -----------------------------------------------------------------------------
# Wrapper helpers.
# -----------------------------------------------------------------------------
def _bn_scale_shift(total_sum, total_sq, count, gamma, beta, eps):
    """Training-mode BatchNorm2d scale/shift from reduced f32 sums (channel-major)."""
    mean = total_sum / count
    var = jnp.maximum(total_sq / count - mean * mean, 0.0)         # cancellation guard
    inv = jax.lax.rsqrt(var + eps)
    scale = gamma.astype(jnp.float32) * inv
    shift = beta.astype(jnp.float32) - mean * scale
    return scale.reshape(-1, 1), shift.reshape(-1, 1)


def _deconv_phase_weights(w_deconv):
    """(Cin, Cout, 4, 4) ConvTranspose2d weight -> (4, Cout, 4*Cin):
    per phase p = 2*ry + rx, the 2x2 taps (a, b) are concatenated along K in the same
    order the kernel concatenates the tap patches."""
    phases = []
    for ry in range(2):
        for rx in range(2):
            taps = [w_deconv[:, :, (3 - ry) - 2 * a, (3 - rx) - 2 * b].T  # (Cout, Cin)
                    for a in range(2) for b in range(2)]
            phases.append(jnp.concatenate(taps, axis=1))            # (Cout, 4*Cin)
    return jnp.stack(phases, axis=0)                                # (4, Cout, 4*Cin)


def decoder_block_linknet_forward(x, params, eps=1e-5):
    N, Cin, H, W = x.shape
    C4 = params["conv1_w"].shape[0]
    NF = params["conv3_w"].shape[0]
    HW = H * W

    cp_1ax = pltpu.CompilerParams(dimension_semantics=("parallel",),
                                  vmem_limit_bytes=VMEM_LIMIT_BYTES)
    cp_2ax = pltpu.CompilerParams(dimension_semantics=("parallel", "parallel"),
                                  vmem_limit_bytes=VMEM_LIMIT_BYTES)

    # ---- stage 1: conv1 (1x1) + partial BN1 stats ------------------------------------
    x2 = x.reshape(N, Cin, HW).astype(jnp.float32)                 # free reshape
    w1 = params["conv1_w"].reshape(C4, Cin).astype(jnp.bfloat16)
    b1 = params["conv1_b"].reshape(C4, 1).astype(jnp.float32)
    y1, s1p, q1p = pl.pallas_call(
        conv1_kernel,
        out_shape=(
            jax.ShapeDtypeStruct((N, C4, HW), jnp.bfloat16),
            jax.ShapeDtypeStruct((N, C4, 1), jnp.float32),
            jax.ShapeDtypeStruct((N, C4, 1), jnp.float32),
        ),
        grid_spec=pltpu.PrefetchScalarGridSpec(
            num_scalar_prefetch=0,
            grid=(N,),
            in_specs=[
                pl.BlockSpec((1, Cin, HW), lambda n: (n, 0, 0)),
                pl.BlockSpec((C4, Cin), lambda n: (0, 0)),
                pl.BlockSpec((C4, 1), lambda n: (0, 0)),
            ],
            out_specs=[
                pl.BlockSpec((1, C4, HW), lambda n: (n, 0, 0)),
                pl.BlockSpec((1, C4, 1), lambda n: (n, 0, 0)),
                pl.BlockSpec((1, C4, 1), lambda n: (n, 0, 0)),
            ],
        ),
        compiler_params=cp_1ax,
    )(x2, w1, b1)
    scale1, shift1 = _bn_scale_shift(jnp.sum(s1p, axis=(0, 2)), jnp.sum(q1p, axis=(0, 2)),
                                     float(N * H * W),
                                     params["norm1_g"], params["norm1_b"], eps)

    # ---- stage 2: (BN1+ReLU fused) + deconv2 + partial BN2 stats ---------------------
    wd = _deconv_phase_weights(params["deconv2_w"]).astype(jnp.bfloat16)   # (4, C4, 4*C4)
    b2 = params["deconv2_b"].reshape(C4, 1).astype(jnp.float32)
    y1_4d = y1.reshape(N, C4, H, W)                                # free HBM reshape
    y2, s2p, q2p = pl.pallas_call(
        deconv_kernel,
        out_shape=(
            jax.ShapeDtypeStruct((N, 4, C4, H, W), jnp.bfloat16),
            jax.ShapeDtypeStruct((N, C4, 1), jnp.float32),
            jax.ShapeDtypeStruct((N, C4, 1), jnp.float32),
        ),
        grid_spec=pltpu.PrefetchScalarGridSpec(
            num_scalar_prefetch=0,
            grid=(N,),
            in_specs=[
                pl.BlockSpec((1, C4, H, W), lambda n: (n, 0, 0, 0)),
                pl.BlockSpec((C4, 1), lambda n: (0, 0)),
                pl.BlockSpec((C4, 1), lambda n: (0, 0)),
                pl.BlockSpec((4, C4, 4 * C4), lambda n: (0, 0, 0)),
                pl.BlockSpec((C4, 1), lambda n: (0, 0)),
            ],
            out_specs=[
                pl.BlockSpec((1, 4, C4, H, W), lambda n: (n, 0, 0, 0, 0)),
                pl.BlockSpec((1, C4, 1), lambda n: (n, 0, 0)),
                pl.BlockSpec((1, C4, 1), lambda n: (n, 0, 0)),
            ],
            scratch_shapes=[pltpu.VMEM((C4, H + 2, W + 2), jnp.bfloat16)],
        ),
        compiler_params=cp_1ax,
    )(y1_4d, scale1, shift1, wd, b2)
    scale2, shift2 = _bn_scale_shift(jnp.sum(s2p, axis=(0, 2)), jnp.sum(q2p, axis=(0, 2)),
                                     float(N * 4 * H * W),
                                     params["norm2_g"], params["norm2_b"], eps)

    # ---- stage 3: (BN2+ReLU fused) + conv3 (1x1), grid over (image, phase) -----------
    w3 = params["conv3_w"].reshape(NF, C4).astype(jnp.bfloat16)
    b3 = params["conv3_b"].reshape(NF, 1).astype(jnp.float32)
    y2r = y2.reshape(N, 4, C4, HW)                                 # free HBM reshape
    y3, s3p, q3p = pl.pallas_call(
        conv3_kernel,
        out_shape=(
            jax.ShapeDtypeStruct((N, 4, NF, HW), jnp.bfloat16),
            jax.ShapeDtypeStruct((N, 4, NF, 1), jnp.float32),
            jax.ShapeDtypeStruct((N, 4, NF, 1), jnp.float32),
        ),
        grid_spec=pltpu.PrefetchScalarGridSpec(
            num_scalar_prefetch=0,
            grid=(N, 4),
            in_specs=[
                pl.BlockSpec((1, 1, C4, HW), lambda n, p: (n, p, 0, 0)),
                pl.BlockSpec((C4, 1), lambda n, p: (0, 0)),
                pl.BlockSpec((C4, 1), lambda n, p: (0, 0)),
                pl.BlockSpec((NF, C4), lambda n, p: (0, 0)),
                pl.BlockSpec((NF, 1), lambda n, p: (0, 0)),
            ],
            out_specs=[
                pl.BlockSpec((1, 1, NF, HW), lambda n, p: (n, p, 0, 0)),
                pl.BlockSpec((1, 1, NF, 1), lambda n, p: (n, p, 0, 0)),
                pl.BlockSpec((1, 1, NF, 1), lambda n, p: (n, p, 0, 0)),
            ],
        ),
        compiler_params=cp_2ax,
    )(y2r, scale2, shift2, w3, b3)
    scale3, shift3 = _bn_scale_shift(jnp.sum(s3p, axis=(0, 1, 3)),
                                     jnp.sum(q3p, axis=(0, 1, 3)),
                                     float(N * 4 * H * W),
                                     params["norm3_g"], params["norm3_b"], eps)

    # ---- final: BN3 + ReLU + phase interleave + NCHW as one fused XLA pass.
    # The interleave/transpose runs on bf16; f32 only on the final write.
    o = jnp.maximum(
        y3.reshape(N, 2, 2, NF, H, W) * scale3.reshape(1, 1, 1, NF, 1, 1)
        + shift3.reshape(1, 1, 1, NF, 1, 1), 0.0).astype(jnp.bfloat16)
    out = o.transpose(0, 3, 4, 1, 5, 2).reshape(N, NF, 2 * H, 2 * W).astype(jnp.float32)
    return out


# -----------------------------------------------------------------------------
# Pure-JAX (f32) reference for verification.
# -----------------------------------------------------------------------------
def reference(x, params, eps=1e-5):
    C4 = params["conv1_w"].shape[0]
    NF = params["conv3_w"].shape[0]

    def bn_relu(y, gamma, beta):
        mean = jnp.mean(y, axis=(0, 2, 3), keepdims=True)
        var = jnp.var(y, axis=(0, 2, 3), keepdims=True)
        yn = (y - mean) * jax.lax.rsqrt(var + eps)
        yn = yn * gamma.reshape(1, -1, 1, 1) + beta.reshape(1, -1, 1, 1)
        return jnp.maximum(yn, 0.0)

    w1 = params["conv1_w"].reshape(C4, -1)
    y = jnp.einsum("nchw,oc->nohw", x, w1) + params["conv1_b"].reshape(1, -1, 1, 1)
    y = bn_relu(y, params["norm1_g"], params["norm1_b"])

    wd = params["deconv2_w"]                                       # (cin, cout, kh, kw)
    w_conv = jnp.transpose(wd, (1, 0, 2, 3))[:, :, ::-1, ::-1]
    y = jax.lax.conv_general_dilated(
        y, w_conv, window_strides=(1, 1), padding=((2, 2), (2, 2)),
        lhs_dilation=(2, 2), dimension_numbers=("NCHW", "OIHW", "NCHW"))
    y = y + params["deconv2_b"].reshape(1, -1, 1, 1)
    y = bn_relu(y, params["norm2_g"], params["norm2_b"])

    w3 = params["conv3_w"].reshape(NF, -1)
    y = jnp.einsum("nchw,oc->nohw", y, w3) + params["conv3_b"].reshape(1, -1, 1, 1)
    y = bn_relu(y, params["norm3_g"], params["norm3_b"])
    return y


if __name__ == "__main__":
    N, IN_CH, H, W = 2, 16, 16, 16
    NF = 8
    C4 = IN_CH // 4

    key = jax.random.PRNGKey(0)
    ks = jax.random.split(key, 13)
    x = jax.random.normal(ks[0], (N, IN_CH, H, W), dtype=jnp.float32)

    params = {
        "conv1_w": 0.2 * jax.random.normal(ks[1], (C4, IN_CH, 1, 1), jnp.float32),
        "conv1_b": 0.1 * jax.random.normal(ks[2], (C4,), jnp.float32),
        "norm1_g": 1.0 + 0.1 * jax.random.normal(ks[3], (C4,), jnp.float32),
        "norm1_b": 0.1 * jax.random.normal(ks[4], (C4,), jnp.float32),
        "deconv2_w": 0.2 * jax.random.normal(ks[5], (C4, C4, 4, 4), jnp.float32),
        "deconv2_b": 0.1 * jax.random.normal(ks[6], (C4,), jnp.float32),
        "norm2_g": 1.0 + 0.1 * jax.random.normal(ks[7], (C4,), jnp.float32),
        "norm2_b": 0.1 * jax.random.normal(ks[8], (C4,), jnp.float32),
        "conv3_w": 0.2 * jax.random.normal(ks[9], (NF, C4, 1, 1), jnp.float32),
        "conv3_b": 0.1 * jax.random.normal(ks[10], (NF,), jnp.float32),
        "norm3_g": 1.0 + 0.1 * jax.random.normal(ks[11], (NF,), jnp.float32),
        "norm3_b": 0.1 * jax.random.normal(ks[12], (NF,), jnp.float32),
    }

    out = decoder_block_linknet_forward(x, params)
    out = jax.block_until_ready(out)

    ref = reference(x, params)
    assert out.shape == (N, NF, 2 * H, 2 * W), out.shape
    # bf16 MXU inputs + bf16 tail transpose vs. a pure-f32 reference -> loosened tolerance.
    assert jnp.allclose(out, ref, atol=5e-2, rtol=5e-2), (
        "mismatch vs reference; max abs err = "
        + str(float(jnp.max(jnp.abs(out - ref)))))
    print("KERNEL_OK")
</pallas_src>

<mosaic_0001>
module attributes {stable_mosaic.version = 11 : i64} {
  func.func @conv1_kernel(%arg0: i32, %arg1: memref<1x16x256xf32, #tpu.memory_space<vmem>>, %arg2: memref<4x16xbf16, #tpu.memory_space<vmem>>, %arg3: memref<4x1xf32, #tpu.memory_space<vmem>>, %arg4: memref<1x4x256xbf16, #tpu.memory_space<vmem>>, %arg5: memref<1x4x1xf32, #tpu.memory_space<vmem>>, %arg6: memref<1x4x1xf32, #tpu.memory_space<vmem>>) attributes {dimension_semantics = [#tpu.dimension_semantics<parallel>], iteration_bounds = array<i64: 2>, scalar_prefetch = 0 : i64, scratch_operands = 0 : i64, tpu.core_type = #tpu.core_type<tc>, window_params = [{transform_indices = @transform_0, window_bounds = array<i64: 1, 16, 256>}, {pipeline_mode = #tpu.pipeline_mode<synchronous>, transform_indices = @transform_1, window_bounds = array<i64: 4, 16>}, {pipeline_mode = #tpu.pipeline_mode<synchronous>, transform_indices = @transform_2, window_bounds = array<i64: 4, 1>}, {transform_indices = @transform_3, window_bounds = array<i64: 1, 4, 256>}, {transform_indices = @transform_4, window_bounds = array<i64: 1, 4, 1>}, {transform_indices = @transform_5, window_bounds = array<i64: 1, 4, 1>}]} {
    %c0 = arith.constant 0 : index
    %c0_0 = arith.constant 0 : index
    %c0_1 = arith.constant 0 : index
    %0 = vector.load %arg1[%c0, %c0_0, %c0_1] : memref<1x16x256xf32, #tpu.memory_space<vmem>>, vector<1x16x256xf32>
    %1 = vector.shape_cast %0 : vector<1x16x256xf32> to vector<16x256xf32>
    %2 = arith.truncf %1 : vector<16x256xf32> to vector<16x256xbf16>
    %c0_2 = arith.constant 0 : index
    %c0_3 = arith.constant 0 : index
    %3 = vector.load %arg2[%c0_2, %c0_3] : memref<4x16xbf16, #tpu.memory_space<vmem>>, vector<4x16xbf16>
    %cst = arith.constant dense<0.000000e+00> : vector<4x256xf32>
    %4 = tpu.matmul %3, %2, %cst {dimension_numbers = #tpu.dot_dimension_numbers<[1], [0], [0], [1], [0, 0, 1, 1], [], []>} : vector<4x16xbf16>, vector<16x256xbf16>, vector<4x256xf32> -> vector<4x256xf32>
    %c0_4 = arith.constant 0 : index
    %c0_5 = arith.constant 0 : index
    %5 = vector.load %arg3[%c0_4, %c0_5] : memref<4x1xf32, #tpu.memory_space<vmem>>, vector<4x1xf32>
    %6 = vector.broadcast %5 : vector<4x1xf32> to vector<4x256xf32>
    %7 = arith.addf %4, %6 : vector<4x256xf32>
    %cst_6 = arith.constant dense<0.000000e+00> : vector<4xf32>
    %8 = vector.multi_reduction <add>, %7, %cst_6 [1] : vector<4x256xf32> to vector<4xf32>
    %9 = vector.shape_cast %8 : vector<4xf32> to vector<4x1xf32>
    %c0_7 = arith.constant 0 : index
    %c0_8 = arith.constant 0 : index
    %c0_9 = arith.constant 0 : index
    %10 = vector.load %arg5[%c0_7, %c0_8, %c0_9] : memref<1x4x1xf32, #tpu.memory_space<vmem>>, vector<1x4x1xf32>
    %11 = vector.shape_cast %10 : vector<1x4x1xf32> to vector<4x1xf32>
    %12 = vector.shape_cast %9 : vector<4x1xf32> to vector<1x4x1xf32>
    tpu.vector_store %arg5[%c0_7, %c0_8, %c0_9], %12 {strides = array<i32>} : memref<1x4x1xf32, #tpu.memory_space<vmem>>, vector<1x4x1xf32>,
    %13 = arith.mulf %7, %7 : vector<4x256xf32>
    %cst_10 = arith.constant dense<0.000000e+00> : vector<4xf32>
    %14 = vector.multi_reduction <add>, %13, %cst_10 [1] : vector<4x256xf32> to vector<4xf32>
    %15 = vector.shape_cast %14 : vector<4xf32> to vector<4x1xf32>
    %c0_11 = arith.constant 0 : index
    %c0_12 = arith.constant 0 : index
    %c0_13 = arith.constant 0 : index
    %16 = vector.load %arg6[%c0_11, %c0_12, %c0_13] : memref<1x4x1xf32, #tpu.memory_space<vmem>>, vector<1x4x1xf32>
    %17 = vector.shape_cast %16 : vector<1x4x1xf32> to vector<4x1xf32>
    %18 = vector.shape_cast %15 : vector<4x1xf32> to vector<1x4x1xf32>
    tpu.vector_store %arg6[%c0_11, %c0_12, %c0_13], %18 {strides = array<i32>} : memref<1x4x1xf32, #tpu.memory_space<vmem>>, vector<1x4x1xf32>,
    %19 = arith.truncf %7 : vector<4x256xf32> to vector<4x256xbf16>
    %c0_14 = arith.constant 0 : index
    %c0_15 = arith.constant 0 : index
    %c0_16 = arith.constant 0 : index
    %20 = vector.load %arg4[%c0_14, %c0_15, %c0_16] : memref<1x4x256xbf16, #tpu.memory_space<vmem>>, vector<1x4x256xbf16>
    %21 = vector.shape_cast %20 : vector<1x4x256xbf16> to vector<4x256xbf16>
    %22 = vector.shape_cast %19 : vector<4x256xbf16> to vector<1x4x256xbf16>
    tpu.vector_store %arg4[%c0_14, %c0_15, %c0_16], %22 {strides = array<i32>} : memref<1x4x256xbf16, #tpu.memory_space<vmem>>, vector<1x4x256xbf16>,
    return
  }
  func.func @transform_0(%arg0: i32) -> (i32, i32, i32) {
    %c0_i32 = arith.constant 0 : i32
    %c0_i32_0 = arith.constant 0 : i32
    %c0_i32_1 = arith.constant 0 : i32
    return %arg0, %c0_i32, %c0_i32_0 : i32, i32, i32
  }
  func.func @transform_1(%arg0: i32) -> (i32, i32) {
    %c0_i32 = arith.constant 0 : i32
    %c0_i32_0 = arith.constant 0 : i32
    %c0_i32_1 = arith.constant 0 : i32
    return %c0_i32, %c0_i32_0 : i32, i32
  }
  func.func @transform_2(%arg0: i32) -> (i32, i32) {
    %c0_i32 = arith.constant 0 : i32
    %c0_i32_0 = arith.constant 0 : i32
    %c0_i32_1 = arith.constant 0 : i32
    return %c0_i32, %c0_i32_0 : i32, i32
  }
  func.func @transform_3(%arg0: i32) -> (i32, i32, i32) {
    %c0_i32 = arith.constant 0 : i32
    %c0_i32_0 = arith.constant 0 : i32
    %c0_i32_1 = arith.constant 0 : i32
    return %arg0, %c0_i32, %c0_i32_0 : i32, i32, i32
  }
  func.func @transform_4(%arg0: i32) -> (i32, i32, i32) {
    %c0_i32 = arith.constant 0 : i32
    %c0_i32_0 = arith.constant 0 : i32
    %c0_i32_1 = arith.constant 0 : i32
    return %arg0, %c0_i32, %c0_i32_0 : i32, i32, i32
  }
  func.func @transform_5(%arg0: i32) -> (i32, i32, i32) {
    %c0_i32 = arith.constant 0 : i32
    %c0_i32_0 = arith.constant 0 : i32
    %c0_i32_1 = arith.constant 0 : i32
    return %arg0, %c0_i32, %c0_i32_0 : i32, i32, i32
  }
}

</mosaic_0001>

<llo_original>
// kernel: tpu_custom_call.1
$region0: #{tpu_custom_call.1}
  #allocation0 [shape = 'u32[]', space=smem, size = 0x4, offset = 0x4, fixed_abs, tag = 'smem constant byte address 0x4 - core index']
  #allocation1 [shape = 'u32[144,128]{1,0:T(1,128)}', space=vmem, size = 0x12000, scoped, tag = 'internal scratch']
  %s0 = inlined_call_operand.hbm [shape: f32[2,16,256], index: 0, kind: input, shape index: {}]
  %s1 = inlined_call_operand.vmem [shape: bf16[4,16], index: 1, kind: input, shape index: {}]
  %s2 = inlined_call_operand.vmem [shape: f32[4,1], index: 2, kind: input, shape index: {}]
  %s3 = inlined_call_operand.hbm [shape: bf16[2,4,256], index: 3, kind: output, shape index: {0}]
  %s4 = inlined_call_operand.vmem [shape: f32[2,4,1], index: 4, kind: output, shape index: {1}]
  %s5 = inlined_call_operand.vmem [shape: f32[2,4,1], index: 5, kind: output, shape index: {2}]
  %6 = xla_tuple %s3, %s4, %s5
  %s7 = sld [smem:[#allocation0]]
  $region65: #{tpu_custom_call.1} parent=0
    _
  %s9 = ssub.s32 1, %s7
  %s10 = scalar_select 0, %s9, %s7
  $region1: #{tpu_custom_call.1} parent=0
    #allocation2 [shape = 'u8[32768]{0}', space=vmem, size = 0x8000, scoped, tag = 'input window, operand 0']
    #allocation3 [shape = 's32[2]{0}', space=sflag, size = 0x8, scoped, tag = 'scoped memory for tpu_custom_call.1']
    #allocation4 [shape = 's32[2]{0}', space=sflag, size = 0x8, scoped, tag = 'scoped memory for tpu_custom_call.1']
    #allocation5 [shape = 'u8[4096]{0}', space=vmem, size = 0x1000, scoped, tag = 'output window, operand 0']
    %11 = vsyncpa [#allocation3], 0
    %s12 = scalar_lea.sflag [#allocation3], 1
    %13 = vsyncpa %s12, 0
    %14 = vsyncpa [#allocation4], 0
    %s15 = scalar_lea.sflag [#allocation4], 1
    %16 = vsyncpa %s15, 0
    loop: start=0, step=1, limit=4
    $region2: #{tpu_custom_call.1} parent=1 // loop_pre_header
      _
    $region3: #{tpu_custom_call.1} parent=1 // loop_header
      %s18 = sphi 0, %s22
      %p19 = scmp.ge.s32.totalorder %s18, 4
      %s28 = sphi 0, %s30
      %s31 = sphi 0, %s28
      %s32 = sphi 0, %s31
      %s48 = sphi 0, %s32
      %s52 = sphi 0, %s52
      %s54 = sphi 0, %s52
      %s55 = sphi 0, %s54
      %s69 = sphi 0, %s55
      %s73 = sphi 0, %s73
      %s75 = sphi 0, %s73
      %s76 = sphi 0, %s75
      %s90 = sphi 0, %s76
      %s96 = sphi 0, %s98
      %s99 = sphi 0, %s96
      %s100 = sphi 0, %s99
      %s116 = sphi 0, %s100
      %s122 = sphi 0, %s124
      %s125 = sphi 0, %s122
      %s126 = sphi 0, %s125
      %s142 = sphi 0, %s126
      %s148 = sphi 0, %s150
      %s151 = sphi 0, %s148
      %s152 = sphi 0, %s151
      %s168 = sphi 0, %s152
    $region4: #{tpu_custom_call.1} parent=1 // loop_header_branch
      %21 = sbr.rel (%p19) target = $region8
    $region5: #{tpu_custom_call.1} parent=1 // loop_body
      %s23 = ssub.s32 %s18, 1
      %s24 = ssub.s32 %s18, 2
      %s25 = sadd.s32 %s18, 1
      %s26 = ssub.s32 %s18, %s25
      %p27 = scmp.eq.s32.totalorder %s26, 0
      %s29 = sadd.s32 %s28, 1
      %s30 = scalar_select %p27, %s28, %s29
      %p33 = pneg %p27
      %p34 = scmp.eq.s32.totalorder %s18, 1
      %p35 = por %p33, %p34
      %p36 = scmp.ne.s32.totalorder %s28, %s31
      %p37 = scmp.eq.s32.totalorder %s18, 0
      %p38 = por %p36, %p37
      %p39 = scmp.ne.s32.totalorder %s28, %s31
      %p40 = scmp.eq.s32.totalorder %s23, 1
      %p41 = por %p39, %p40
      %p42 = scmp.ne.s32.totalorder %s31, %s32
      %p43 = scmp.eq.s32.totalorder %s23, 0
      %p44 = por %p42, %p43
      %p45 = scmp.ne.s32.totalorder %s31, %s32
      %p46 = scmp.eq.s32.totalorder %s24, 1
      %p47 = por %p45, %p46
      %p49 = scmp.ne.s32.totalorder %s32, %s48
      %p50 = scmp.eq.s32.totalorder %s24, 0
      %p51 = por %p49, %p50
      %s53 = sadd.s32 %s52, 1
      %p56 = scmp.eq.s32.totalorder %s18, 1
      %p57 = scmp.ne.s32.totalorder %s52, %s54
      %p58 = scmp.eq.s32.totalorder %s18, 0
      %p59 = por %p57, %p58
      %p60 = scmp.ne.s32.totalorder %s52, %s54
      %p61 = scmp.eq.s32.totalorder %s23, 1
      %p62 = por %p60, %p61
      %p63 = scmp.ne.s32.totalorder %s54, %s55
      %p64 = scmp.eq.s32.totalorder %s23, 0
      %p65 = por %p63, %p64
      %p66 = scmp.ne.s32.totalorder %s54, %s55
      %p67 = scmp.eq.s32.totalorder %s24, 1
      %p68 = por %p66, %p67
      %p70 = scmp.ne.s32.totalorder %s55, %s69
      %p71 = scmp.eq.s32.totalorder %s24, 0
      %p72 = por %p70, %p71
      %s74 = sadd.s32 %s73, 1
      %p77 = scmp.eq.s32.totalorder %s18, 1
      %p78 = scmp.ne.s32.totalorder %s73, %s75
      %p79 = scmp.eq.s32.totalorder %s18, 0
      %p80 = por %p78, %p79
      %p81 = scmp.ne.s32.totalorder %s73, %s75
      %p82 = scmp.eq.s32.totalorder %s23, 1
      %p83 = por %p81, %p82
      %p84 = scmp.ne.s32.totalorder %s75, %s76
      %p85 = scmp.eq.s32.totalorder %s23, 0
      %p86 = por %p84, %p85
      %p87 = scmp.ne.s32.totalorder %s75, %s76
      %p88 = scmp.eq.s32.totalorder %s24, 1
      %p89 = por %p87, %p88
      %p91 = scmp.ne.s32.totalorder %s76, %s90
      %p92 = scmp.eq.s32.totalorder %s24, 0
      %p93 = por %p91, %p92
      %s94 = ssub.s32 %s18, %s25
      %p95 = scmp.eq.s32.totalorder %s94, 0
      %s97 = sadd.s32 %s96, 1
      %s98 = scalar_select %p95, %s96, %s97
      %p101 = pneg %p95
      %p102 = scmp.eq.s32.totalorder %s18, 1
      %p103 = por %p101, %p102
      %p104 = scmp.ne.s32.totalorder %s96, %s99
      %p105 = scmp.eq.s32.totalorder %s18, 0
      %p106 = por %p104, %p105
      %p107 = scmp.ne.s32.totalorder %s96, %s99
      %p108 = scmp.eq.s32.totalorder %s23, 1
      %p109 = por %p107, %p108
      %p110 = scmp.ne.s32.totalorder %s99, %s100
      %p111 = scmp.eq.s32.totalorder %s23, 0
      %p112 = por %p110, %p111
      %p113 = scmp.ne.s32.totalorder %s99, %s100
      %p114 = scmp.eq.s32.totalorder %s24, 1
      %p115 = por %p113, %p114
      %p117 = scmp.ne.s32.totalorder %s100, %s116
      %p118 = scmp.eq.s32.totalorder %s24, 0
      %p119 = por %p117, %p118
      %s120 = ssub.s32 %s18, %s25
      %p121 = scmp.eq.s32.totalorder %s120, 0
      %s123 = sadd.s32 %s122, 1
      %s124 = scalar_select %p121, %s122, %s123
      %p127 = pneg %p121
      %p128 = scmp.eq.s32.totalorder %s18, 1
      %p129 = por %p127, %p128
      %p130 = scmp.ne.s32.totalorder %s122, %s125
      %p131 = scmp.eq.s32.totalorder %s18, 0
      %p132 = por %p130, %p131
      %p133 = scmp.ne.s32.totalorder %s122, %s125
      %p134 = scmp.eq.s32.totalorder %s23, 1
      %p135 = por %p133, %p134
      %p136 = scmp.ne.s32.totalorder %s125, %s126
      %p137 = scmp.eq.s32.totalorder %s23, 0
      %p138 = por %p136, %p137
      %p139 = scmp.ne.s32.totalorder %s125, %s126
      %p140 = scmp.eq.s32.totalorder %s24, 1
      %p141 = por %p139, %p140
      %p143 = scmp.ne.s32.totalorder %s126, %s142
      %p144 = scmp.eq.s32.totalorder %s24, 0
      %p145 = por %p143, %p144
      %s146 = ssub.s32 %s18, %s25
      %p147 = scmp.eq.s32.totalorder %s146, 0
      %s149 = sadd.s32 %s148, 1
      %s150 = scalar_select %p147, %s148, %s149
      %p153 = pneg %p147
      %p154 = scmp.eq.s32.totalorder %s18, 1
      %p155 = por %p153, %p154
      %p156 = scmp.ne.s32.totalorder %s148, %s151
      %p157 = scmp.eq.s32.totalorder %s18, 0
      %p158 = por %p156, %p157
      %p159 = scmp.ne.s32.totalorder %s148, %s151
      %p160 = scmp.eq.s32.totalorder %s23, 1
      %p161 = por %p159, %p160
      %p162 = scmp.ne.s32.totalorder %s151, %s152
      %p163 = scmp.eq.s32.totalorder %s23, 0
      %p164 = por %p162, %p163
      %p165 = scmp.ne.s32.totalorder %s151, %s152
      %p166 = scmp.eq.s32.totalorder %s24, 1
      %p167 = por %p165, %p166
      %p169 = scmp.ne.s32.totalorder %s152, %s168
      %p170 = scmp.eq.s32.totalorder %s24, 0
      %p171 = por %p169, %p170
      %p172 = scmp.le.s32.totalorder 1, %s18
      %p173 = scmp.lt.s32.totalorder %s18, 3
      %p174 = pnand %p172, %p173
      %p175 = pneg %p174
      // Predicated region
      $region9: #{tpu_custom_call.1} parent=5 // pred_check
        _
      $region10: #{tpu_custom_call.1} parent=5 // pred_check_branch
        %177 = sbr.rel (%p174) target = $region12
      $region11: #{tpu_custom_call.1} parent=5 // pred_region
        %s178 = ssub.s32 %s18, 1
        // Predicated region
        $region13: #{tpu_custom_call.1} parent=11 // pred_check
          %p179 = pneg %p65
        $region14: #{tpu_custom_call.1} parent=11 // pred_check_branch
          %181 = sbr.rel (%p179) target = $region16
        $region15: #{tpu_custom_call.1} parent=11 // pred_region
          _
        $region16: #{tpu_custom_call.1} parent=11 // pred_fallthru
          _
        // Predicated region
        $region17: #{tpu_custom_call.1} parent=11 // pred_check
          %p182 = pneg %p86
        $region18: #{tpu_custom_call.1} parent=11 // pred_check_branch
          %184 = sbr.rel (%p182) target = $region20
        $region19: #{tpu_custom_call.1} parent=11 // pred_region
          _
        $region20: #{tpu_custom_call.1} parent=11 // pred_fallthru
          _
      $region12: #{tpu_custom_call.1} parent=5 // pred_fallthru
        _
      %p185 = scmp.lt.s32.totalorder %s18, 2
      // Predicated region
      $region21: #{tpu_custom_call.1} parent=5 // pred_check
        %p186 = pneg %p185
      $region22: #{tpu_custom_call.1} parent=5 // pred_check_branch
        %188 = sbr.rel (%p186) target = $region24
      $region23: #{tpu_custom_call.1} parent=5 // pred_region
        // Predicated region
        $region25: #{tpu_custom_call.1} parent=23 // pred_check
          %p189 = pneg %p38
        $region26: #{tpu_custom_call.1} parent=23 // pred_check_branch
          %191 = sbr.rel (%p189) target = $region28
        $region27: #{tpu_custom_call.1} parent=23 // pred_region
          %s192 = sand.u32 %s28, 1
          %s193 = scalar_lea.sflag [#allocation3], %s192
          %s194 = sand.u32 %s28, 1
          %s195 = smul.addr %s194, 32
          %s196 = scalar_lea.vmem [#allocation2], %s195
          %s198 = ssub.s32 512, 512
          %199 = vsyncadd %s193, %s198
          %s200 = smul.addr %s18, 4
          %s201 = smul.addr %s200, 128
          %s202 = scalar_lea.hbm %s0, %s201
          %s203 = sshll.u32 %s196, 4
          %s204 = int_to_ptr.vmem [resolvable:$true] %s203
          %209 = dma.hbm_to_vmem [thread:$0]  %s202, 512, %s204, %s193, 256, 256, 16
        $region28: #{tpu_custom_call.1} parent=23 // pred_fallthru
          _
      $region24: #{tpu_custom_call.1} parent=5 // pred_fallthru
        _
      %p210 = scmp.le.s32.totalorder 1, %s18
      %p211 = scmp.lt.s32.totalorder %s18, 3
      %p212 = pnand %p210, %p211
      %p213 = pneg %p212
      // Predicated region
      $region29: #{tpu_custom_call.1} parent=5 // pred_check
        _
      $region30: #{tpu_custom_call.1} parent=5 // pred_check_branch
        %215 = sbr.rel (%p212) target = $region32
      $region31: #{tpu_custom_call.1} parent=5 // pred_region
        %s216 = ssub.s32 %s18, 1
        %s217 = sand.u32 %s31, 1
        %s218 = scalar_lea.sflag [#allocation3], %s217
        %s219 = sand.u32 %s31, 1
        %s220 = smul.addr %s219, 32
        %s221 = scalar_lea.vmem [#allocation2], %s220
        // Predicated region
        $region33: #{tpu_custom_call.1} parent=31 // pred_check
          %p222 = pneg %p44
        $region34: #{tpu_custom_call.1} parent=31 // pred_check_branch
          %224 = sbr.rel (%p222) target = $region36
        $region35: #{tpu_custom_call.1} parent=31 // pred_region
          %225 = dma.done %s218, 512
        $region36: #{tpu_custom_call.1} parent=31 // pred_fallthru
          _
        %s226 = sand.u32 %s31, 1
        %s227 = scalar_lea.sflag [#allocation3], %s226
        %s228 = sand.u32 %s31, 1
        %s229 = smul.addr %s228, 32
        %s230 = scalar_lea.vmem [#allocation2], %s229
        %p231 = pneg %p44
        %p232 = pneg %p41
        %p233 = pneg %p65
        %p234 = pneg %p62
        %p235 = pneg %p86
        %p236 = pneg %p83
        %p237 = pneg %p112
        %p238 = pneg %p109
        %s239 = sand.u32 %s99, 1
        %s240 = scalar_lea.sflag [#allocation4], %s239
        %s241 = sand.u32 %s99, 1
        %s242 = smul.addr %s241, 4
        %s243 = scalar_lea.vmem [#allocation5], %s242
        %p244 = pneg %p138
        %p245 = pneg %p135
        %p246 = scmp.lt.s32.totalorder %s23, 1
        %s247 = scalar_select %p246, %s23, 1
        %s248 = smul.addr %s247, 4
        %s249 = scalar_lea.vmem %s4, %s248
        %p250 = pneg %p164
        %p251 = pneg %p161
        %p252 = scmp.lt.s32.totalorder %s23, 1
        %s253 = scalar_select %p252, %s23, 1
        %s254 = smul.addr %s253, 4
        %s255 = scalar_lea.vmem %s5, %s254
        %p256 = scmp.lt.s32.totalorder %s23, 1
        %s257 = scalar_select %p256, %s23, 1
        %s258 = smul.addr %s257, 4
        %s259 = scalar_lea.vmem %s4, %s258
        %p260 = scmp.lt.s32.totalorder %s23, 1
        %s261 = scalar_select %p260, %s23, 1
        %s262 = smul.addr %s261, 4
        %s263 = scalar_lea.vmem %s5, %s262
        %v265 = vld [vmem:[%s221] sm:$0xff]
        %v266 = vld [vmem:[%s221 + $0x8] sm:$0xff]
        %v267 = vld [vmem:[%s221 + $0x10] sm:$0xff]
        %v268 = vld [vmem:[%s221 + $0x18] sm:$0xff]
        %v269 = vpack.c.bf16 %v267, %v265
        %v270 = vpack.c.bf16 %v268, %v266
        %v271 = vld [vmem:[%s1] sm:$0x3]
        %v272 = vld [vmem:[%s2] sm:$0xf]
        %274 = vset.pattern.permute.xlu0 0
        %275 = vperm.xlu0 %274, %v272
        %v276 = vpop.permute.xlu0 %275
        %vm278 = vcmask 130048
        %v280 = vsel %vm278, %v271, 0
        %282 = vmatprep.subr.bf16.mxu0 0
        %283 = vmatpush1.bf16.msra.mxu0 0
        %284 = vmatprep.subr.bf16.mxu0 0
        %285 = vmatpush1.bf16.msra.mxu0 0
        %286 = vmatprep.subr.bf16.mxu0 0
        %287 = vmatpush1.bf16.msra.mxu0 0
        %288 = vmatprep.subr.bf16.mxu0 0
        %289 = vmatpush1.bf16.msra.mxu0 0
        %290 = vmatprep.subr.bf16.mxu0 0
        %291 = vmatpush1.bf16.msra.mxu0 0
        %292 = vmatprep.subr.bf16.mxu0 0
        %293 = vmatpush1.bf16.msra.mxu0 0
        %294 = vmatprep.subr.bf16.mxu0 0
        %295 = vmatpush1.bf16.msra.mxu0 0
        %296 = vmatprep.subr.bf16.mxu0 %v270
        %297 = vmatpush1.bf16.msra.mxu0 %v269
        %298 = vmatprep.subr.bf16.mxu0 0
        %299 = vmatpush2.bf16.msra.mxu0 0
        %300 = vmatprep.subr.bf16.mxu0 0
        %301 = vmatpush2.bf16.msra.mxu0 0
        %302 = vmatprep.subr.bf16.mxu0 0
        %303 = vmatpush2.bf16.msra.mxu0 0
        %304 = vmatprep.subr.bf16.mxu0 0
        %305 = vmatpush2.bf16.msra.mxu0 0
        %306 = vmatprep.subr.bf16.mxu0 0
        %307 = vmatpush2.bf16.msra.mxu0 0
        %308 = vmatprep.subr.bf16.mxu0 0
        %309 = vmatpush2.bf16.msra.mxu0 0
        %310 = vmatprep.subr.bf16.mxu0 0
        %311 = vmatpush2.bf16.msra.mxu0 0
        %312 = vmatprep.subr.bf16.mxu0 0
        %313 = vmatpush2.bf16.msra.mxu0 0
        %314 = vmatprep.mubr.bf16.mxu0 0
        %315 = vmatmul.mubr.bf16.gmra.mxu0 %v280
        %v316 = vpop.f32.mrf.mxu0
        %v317 = vadd.f32 %v276, %v316
        %v318 = vpop.f32.mrf.mxu0
        %v319 = vadd.f32 %v276, %v318
        %v320 = vpop.f32.mrf.mxu0
        %v321 = vpop.f32.mrf.mxu0
        %322 = vdwg.mxu0
        %vm323 = vcmask 1043456
        %v324 = vsel %vm323, %v317, 0.0
        %v325 = vsel %vm323, %v319, 0.0
        %v326 = vadd.f32 %v324, %v325
        %327 = vadd.xlane.f32.xlu0 %v326
        %v328 = vpop.xlane.xlu0 %327
        %vm329 = vcmask 3072
        %330 = vst.msk [vmem:[%s259] sm:$0xf] %vm329, %v328
        %v331 = vmul.f32 %v317, %v317
        %v332 = vmul.f32 %v319, %v319
        %v333 = vsel %vm323, %v331, 0.0
        %v334 = vsel %vm323, %v332, 0.0
        %v335 = vadd.f32 %v333, %v334
        %336 = vadd.xlane.f32.xlu0 %v335
        %v337 = vpop.xlane.xlu0 %336
        %338 = vst.msk [vmem:[%s263] sm:$0xf] %vm329, %v337
        %v339 = vpack.c.bf16 %v317, %v317
        %v340 = vpack.c.bf16 %v319, %v319
        %v343 = vcombine.low %v339, %v340
        %v345 = vunpack.c.l.s4 1983009808
        %v346 = vunpack.c.0.s8 %v345
        %v347 = vlaneseq
        %v348 = vshrl.u32 %v347, 7
        %v349 = vsub.s32 %v346, %v348
        %v350 = vrot.slane %v343, %v349
        %352 = vst [vmem:[%s243] sm:$0xf] %v350
        %s353 = sand.u32 %s99, 1
        %s354 = scalar_lea.sflag [#allocation4], %s353
        %s355 = sand.u32 %s99, 1
        %s356 = smul.addr %s355, 4
        %s357 = scalar_lea.vmem [#allocation5], %s356
        %p358 = scmp.lt.s32.totalorder %s23, 1
        %s359 = scalar_select %p358, %s23, 1
        %s360 = smul.addr %s359, 4
        %s361 = scalar_lea.vmem %s4, %s360
        %p362 = scmp.lt.s32.totalorder %s23, 1
        %s363 = scalar_select %p362, %s23, 1
        %s364 = smul.addr %s363, 4
        %s365 = scalar_lea.vmem %s5, %s364
        // Predicated region
        $region37: #{tpu_custom_call.1} parent=31 // pred_check
          %p366 = pneg %p109
        $region38: #{tpu_custom_call.1} parent=31 // pred_check_branch
          %368 = sbr.rel (%p366) target = $region40
        $region39: #{tpu_custom_call.1} parent=31 // pred_region
          %s370 = ssub.s32 64, 64
          %371 = vsyncadd %s354, %s370
          %s372 = smul.addr %s23, 2
          %s373 = smul.addr %s372, 32
          %s374 = scalar_lea.hbm %s3, %s373
          %s376 = sshll.u32 %s357, 4
          %s377 = int_to_ptr.vmem [resolvable:$true] %s376
          %379 = dma.vmem_to_hbm [thread:$0]  %s377, 64, %s374, %s354
        $region40: #{tpu_custom_call.1} parent=31 // pred_fallthru
          _
        // Predicated region
        $region41: #{tpu_custom_call.1} parent=31 // pred_check
          %p380 = pneg %p135
        $region42: #{tpu_custom_call.1} parent=31 // pred_check_branch
          %382 = sbr.rel (%p380) target = $region44
        $region43: #{tpu_custom_call.1} parent=31 // pred_region
          _
        $region44: #{tpu_custom_call.1} parent=31 // pred_fallthru
          _
        // Predicated region
        $region45: #{tpu_custom_call.1} parent=31 // pred_check
          %p383 = pneg %p161
        $region46: #{tpu_custom_call.1} parent=31 // pred_check_branch
          %385 = sbr.rel (%p383) target = $region48
        $region47: #{tpu_custom_call.1} parent=31 // pred_region
          _
        $region48: #{tpu_custom_call.1} parent=31 // pred_fallthru
          _
      $region32: #{tpu_custom_call.1} parent=5 // pred_fallthru
        _
      %p386 = scmp.le.s32.totalorder 2, %s18
      // Predicated region
      $region49: #{tpu_custom_call.1} parent=5 // pred_check
        %p387 = pneg %p386
      $region50: #{tpu_custom_call.1} parent=5 // pred_check_branch
        %389 = sbr.rel (%p387) target = $region52
      $region51: #{tpu_custom_call.1} parent=5 // pred_region
        %s390 = ssub.s32 %s18, 2
        // Predicated region
        $region53: #{tpu_custom_call.1} parent=51 // pred_check
          %p391 = pneg %p115
        $region54: #{tpu_custom_call.1} parent=51 // pred_check_branch
          %393 = sbr.rel (%p391) target = $region56
        $region55: #{tpu_custom_call.1} parent=51 // pred_region
          %s394 = sand.u32 %s100, 1
          %s395 = scalar_lea.sflag [#allocation4], %s394
          %s396 = sand.u32 %s100, 1
          %s397 = smul.addr %s396, 4
          %s398 = scalar_lea.vmem [#allocation5], %s397
          %399 = dma.done %s395, 64
        $region56: #{tpu_custom_call.1} parent=51 // pred_fallthru
          _
        // Predicated region
        $region57: #{tpu_custom_call.1} parent=51 // pred_check
          %p400 = pneg %p141
        $region58: #{tpu_custom_call.1} parent=51 // pred_check_branch
          %402 = sbr.rel (%p400) target = $region60
        $region59: #{tpu_custom_call.1} parent=51 // pred_region
          %p403 = scmp.lt.s32.totalorder %s24, 1
          %s404 = scalar_select %p403, %s24, 1
          %s405 = smul.addr %s404, 4
          %s406 = scalar_lea.vmem %s4, %s405
        $region60: #{tpu_custom_call.1} parent=51 // pred_fallthru
          _
        // Predicated region
        $region61: #{tpu_custom_call.1} parent=51 // pred_check
          %p407 = pneg %p167
        $region62: #{tpu_custom_call.1} parent=51 // pred_check_branch
          %409 = sbr.rel (%p407) target = $region64
        $region63: #{tpu_custom_call.1} parent=51 // pred_region
          %p410 = scmp.lt.s32.totalorder %s24, 1
          %s411 = scalar_select %p410, %s24, 1
          %s412 = smul.addr %s411, 4
          %s413 = scalar_lea.vmem %s5, %s412
        $region64: #{tpu_custom_call.1} parent=51 // pred_fallthru
          _
      $region52: #{tpu_custom_call.1} parent=5 // pred_fallthru
        _
    $region6: #{tpu_custom_call.1} parent=1 // loop_footer
      %s22 = sadd.s32 1, %s18
    $region7: #{tpu_custom_call.1} parent=1 // loop_footer_branch
      %17 = sbr.rel target = $region3
    $region8: #{tpu_custom_call.1} parent=1 // loop_exit
      _
    %414 = vsyncpa [#allocation3], 1
    %s415 = scalar_lea.sflag [#allocation3], 1
    %416 = vsyncpa %s415, 1
    %417 = vsyncpa [#allocation4], 1
    %s418 = scalar_lea.sflag [#allocation4], 1
    %419 = vsyncpa %s418, 1

</llo_original>
